<compile_context>
chip_gen: v7x
topology: tpu7x:2x2x1
jax: 0.10.0
libtpu: 0.0.40
codegen_flags: <defaults>
</compile_context>

<pallas_src>
from functools import partial

import jax
import jax.numpy as jnp
from jax.experimental import pallas as pl
from jax.experimental.pallas import tpu as pltpu  # noqa: F401  (TPU backend import)


def _fusion_kernel(x1_ref, x2_ref, x3_ref, w1_ref, w2_ref, w3_ref, o_ref, *, rank):
    """Three tiny MXU dots + VPU product + one lane-sum + EUP sigmoids.

    x{m}_ref : (B, C_m)       raw features for modality m (no bias column).
    w{m}_ref : (C_m + 1, 2R)  packed core weight; last row = bias (the 'ones' column).
               Column layout: col = o*rank + r.  w_out is folded into w1, and the
               o=0 columns of w1 (cols 0:rank, bias row included) are negated.
    o_ref    : (B, 2)         softmax probabilities.
    """
    del rank  # layout is baked into the packed weights

    def branch(x_ref, w_ref):
        c = x_ref.shape[1]
        w = w_ref[...]                                    # (C+1, 2R)
        return (jnp.dot(x_ref[...], w[:c, :], preferred_element_type=jnp.float32)
                + w[c:c + 1, :])                          # (B, 2R), bias add on VPU

    y1 = branch(x1_ref, w1_ref)
    y2 = branch(x2_ref, w2_ref)
    y3 = branch(x3_ref, w3_ref)

    # Elementwise rank-fusion product (VPU).
    z = y1 * y2 * y3                                      # (B, 2R)

    # Sign of the o=0 segment is pre-folded into w1, so a single unmasked lane
    # reduction gives the logit difference d = s1 - s0 directly (XLU).
    d = jnp.sum(z, axis=-1, keepdims=True)                # (B, 1)

    # 2-class softmax via two sigmoids (EUP; symmetric accuracy for large |d|).
    p1 = jax.nn.sigmoid(d)
    p0 = jax.nn.sigmoid(-d)

    out_lane = jax.lax.broadcasted_iota(jnp.int32, o_ref.shape, 1)
    o_ref[...] = jnp.where(out_lane == 0, p0, p1)


def pack_params(w_core1, w_core2, w_core3, w_out):
    """One-time parameter packing (do this at init, NOT per call).

    Returns three f32 buffers w{1,2,3} of shape (C_m + 1, 2*rank):
      rows 0:C_m  main weights, row C_m  bias ('ones' column) row,
      column layout col = o*rank + r,
      with w_out folded into w1 and the o=0 columns of w1 negated (so the kernel's
      lane-sum of the fused product yields s1 - s0 directly).
    """
    rank = w_out.shape[0]

    def to_2d(w):  # (rank, C+1, 2) -> (C+1, 2*rank), col = o*rank + r
        return jnp.transpose(w, (1, 2, 0)).reshape(w.shape[1], 2 * rank)

    w_out_f = w_out.astype(jnp.float32)
    w1 = to_2d(w_core1.astype(jnp.float32) * w_out_f[:, None, None])  # fold w_out
    w1 = w1.at[:, :rank].multiply(-1.0)                               # fold o=0 sign
    w2 = to_2d(w_core2.astype(jnp.float32))
    w3 = to_2d(w_core3.astype(jnp.float32))
    return w1, w2, w3


def tensor_fusion(eeg_x, nirs_oxy_x, nirs_deoxy_x, w1, w2, w3, rank):
    """Per-call path: a single 6-input pallas_call, no wrapper-side concat."""
    B = eeg_x.shape[0]
    eeg_x = eeg_x.astype(jnp.float32)
    nirs_oxy_x = nirs_oxy_x.astype(jnp.float32)
    nirs_deoxy_x = nirs_deoxy_x.astype(jnp.float32)

    assert w1.shape == (eeg_x.shape[1] + 1, 2 * rank), (w1.shape, rank)
    assert w2.shape == (nirs_oxy_x.shape[1] + 1, 2 * rank), (w2.shape, rank)
    assert w3.shape == (nirs_deoxy_x.shape[1] + 1, 2 * rank), (w3.shape, rank)

    full = lambda shape: pl.BlockSpec(shape, lambda: tuple(0 for _ in shape))

    return pl.pallas_call(
        partial(_fusion_kernel, rank=rank),
        out_shape=jax.ShapeDtypeStruct((B, 2), jnp.float32),
        grid=(),
        in_specs=[full(eeg_x.shape), full(nirs_oxy_x.shape), full(nirs_deoxy_x.shape),
                  full(w1.shape), full(w2.shape), full(w3.shape)],
        out_specs=full((B, 2)),
    )(eeg_x, nirs_oxy_x, nirs_deoxy_x, w1, w2, w3)


def _reference(eeg_x, nirs_oxy_x, nirs_deoxy_x, w_core1, w_core2, w_core3, w_out):
    B = eeg_x.shape[0]
    ones = jnp.ones((B, 1), dtype=eeg_x.dtype)
    x1 = jnp.concatenate([eeg_x, ones], axis=1)
    x2 = jnp.concatenate([nirs_oxy_x, ones], axis=1)
    x3 = jnp.concatenate([nirs_deoxy_x, ones], axis=1)
    y1 = jnp.einsum('bc,rco->bro', x1, w_core1)
    y2 = jnp.einsum('bc,rco->bro', x2, w_core2)
    y3 = jnp.einsum('bc,rco->bro', x3, w_core3)
    logits = jnp.einsum('bro,bro,bro,r->bo', y1, y2, y3, w_out)
    return jax.nn.softmax(logits, axis=-1)


if __name__ == "__main__":
    B = 8
    EEG_CH = 8
    NIRS_CH = 4
    RANK = 16

    key = jax.random.PRNGKey(0)
    k1, k2, k3, k4, k5, k6, k7 = jax.random.split(key, 7)

    # Deterministic parameter init mirroring the PyTorch module's __init__.
    w_core1 = jax.random.normal(k1, (RANK, EEG_CH + 1, 2), jnp.float32) * (1.0 / EEG_CH)
    w_core2 = jax.random.normal(k2, (RANK, NIRS_CH + 1, 2), jnp.float32) * (1.0 / NIRS_CH)
    w_core3 = jax.random.normal(k3, (RANK, NIRS_CH + 1, 2), jnp.float32) * (1.0 / NIRS_CH)
    w_out = jax.random.normal(k4, (RANK,), jnp.float32) * (1.0 / RANK)

    eeg_x = jax.random.normal(k5, (B, EEG_CH), jnp.float32)
    nirs_oxy_x = jax.random.normal(k6, (B, NIRS_CH), jnp.float32)
    nirs_deoxy_x = jax.random.normal(k7, (B, NIRS_CH), jnp.float32)

    # One-time weight packing (parameter-init path, not per forward call).
    w1, w2, w3 = jax.block_until_ready(pack_params(w_core1, w_core2, w_core3, w_out))

    out = tensor_fusion(eeg_x, nirs_oxy_x, nirs_deoxy_x, w1, w2, w3, RANK)
    out = jax.block_until_ready(out)

    ref = _reference(eeg_x, nirs_oxy_x, nirs_deoxy_x,
                     w_core1, w_core2, w_core3, w_out)
    assert out.shape == (B, 2)
    assert jnp.allclose(out, ref, atol=1e-5, rtol=1e-5), (out, ref)

    print("KERNEL_OK")
</pallas_src>

<mosaic_0001>
module attributes {stable_mosaic.version = 11 : i64} {
  func.func @_fusion_kernel(%arg0: memref<8x8xf32, #tpu.memory_space<vmem>>, %arg1: memref<8x4xf32, #tpu.memory_space<vmem>>, %arg2: memref<8x4xf32, #tpu.memory_space<vmem>>, %arg3: memref<9x32xf32, #tpu.memory_space<vmem>>, %arg4: memref<5x32xf32, #tpu.memory_space<vmem>>, %arg5: memref<5x32xf32, #tpu.memory_space<vmem>>, %arg6: memref<8x2xf32, #tpu.memory_space<vmem>>) attributes {dimension_semantics = [], scalar_prefetch = 0 : i64, scratch_operands = 0 : i64, tpu.core_type = #tpu.core_type<tc>} {
    %c0 = arith.constant 0 : index
    %c0_0 = arith.constant 0 : index
    %0 = vector.load %arg3[%c0, %c0_0] : memref<9x32xf32, #tpu.memory_space<vmem>>, vector<9x32xf32>
    %c0_1 = arith.constant 0 : index
    %c0_2 = arith.constant 0 : index
    %1 = vector.load %arg0[%c0_1, %c0_2] : memref<8x8xf32, #tpu.memory_space<vmem>>, vector<8x8xf32>
    %2 = vector.extract_strided_slice %0 {offsets = [0, 0], sizes = [8, 32], strides = [1, 1]} : vector<9x32xf32> to vector<8x32xf32>
    %cst = arith.constant dense<0.000000e+00> : vector<8x32xf32>
    %3 = tpu.matmul %1, %2, %cst {dimension_numbers = #tpu.dot_dimension_numbers<[1], [0], [0], [1], [0, 0, 1, 1], [], []>} : vector<8x8xf32>, vector<8x32xf32>, vector<8x32xf32> -> vector<8x32xf32>
    %4 = vector.extract_strided_slice %0 {offsets = [8, 0], sizes = [1, 32], strides = [1, 1]} : vector<9x32xf32> to vector<1x32xf32>
    %5 = vector.broadcast %4 : vector<1x32xf32> to vector<8x32xf32>
    %6 = arith.addf %3, %5 : vector<8x32xf32>
    %c0_3 = arith.constant 0 : index
    %c0_4 = arith.constant 0 : index
    %7 = vector.load %arg4[%c0_3, %c0_4] : memref<5x32xf32, #tpu.memory_space<vmem>>, vector<5x32xf32>
    %c0_5 = arith.constant 0 : index
    %c0_6 = arith.constant 0 : index
    %8 = vector.load %arg1[%c0_5, %c0_6] : memref<8x4xf32, #tpu.memory_space<vmem>>, vector<8x4xf32>
    %9 = vector.extract_strided_slice %7 {offsets = [0, 0], sizes = [4, 32], strides = [1, 1]} : vector<5x32xf32> to vector<4x32xf32>
    %cst_7 = arith.constant dense<0.000000e+00> : vector<8x32xf32>
    %10 = tpu.matmul %8, %9, %cst_7 {dimension_numbers = #tpu.dot_dimension_numbers<[1], [0], [0], [1], [0, 0, 1, 1], [], []>} : vector<8x4xf32>, vector<4x32xf32>, vector<8x32xf32> -> vector<8x32xf32>
    %11 = vector.extract_strided_slice %7 {offsets = [4, 0], sizes = [1, 32], strides = [1, 1]} : vector<5x32xf32> to vector<1x32xf32>
    %12 = vector.broadcast %11 : vector<1x32xf32> to vector<8x32xf32>
    %13 = arith.addf %10, %12 : vector<8x32xf32>
    %c0_8 = arith.constant 0 : index
    %c0_9 = arith.constant 0 : index
    %14 = vector.load %arg5[%c0_8, %c0_9] : memref<5x32xf32, #tpu.memory_space<vmem>>, vector<5x32xf32>
    %c0_10 = arith.constant 0 : index
    %c0_11 = arith.constant 0 : index
    %15 = vector.load %arg2[%c0_10, %c0_11] : memref<8x4xf32, #tpu.memory_space<vmem>>, vector<8x4xf32>
    %16 = vector.extract_strided_slice %14 {offsets = [0, 0], sizes = [4, 32], strides = [1, 1]} : vector<5x32xf32> to vector<4x32xf32>
    %cst_12 = arith.constant dense<0.000000e+00> : vector<8x32xf32>
    %17 = tpu.matmul %15, %16, %cst_12 {dimension_numbers = #tpu.dot_dimension_numbers<[1], [0], [0], [1], [0, 0, 1, 1], [], []>} : vector<8x4xf32>, vector<4x32xf32>, vector<8x32xf32> -> vector<8x32xf32>
    %18 = vector.extract_strided_slice %14 {offsets = [4, 0], sizes = [1, 32], strides = [1, 1]} : vector<5x32xf32> to vector<1x32xf32>
    %19 = vector.broadcast %18 : vector<1x32xf32> to vector<8x32xf32>
    %20 = arith.addf %17, %19 : vector<8x32xf32>
    %21 = arith.mulf %6, %13 : vector<8x32xf32>
    %22 = arith.mulf %21, %20 : vector<8x32xf32>
    %cst_13 = arith.constant dense<0.000000e+00> : vector<8xf32>
    %23 = vector.multi_reduction <add>, %22, %cst_13 [1] : vector<8x32xf32> to vector<8xf32>
    %24 = vector.shape_cast %23 : vector<8xf32> to vector<8x1xf32>
    %25 = arith.negf %24 : vector<8x1xf32>
    %26 = math.exp %25 : vector<8x1xf32>
    %cst_14 = arith.constant 1.000000e+00 : f32
    %27 = vector.broadcast %cst_14 : f32 to vector<8x1xf32>
    %28 = arith.addf %27, %26 : vector<8x1xf32>
    %29 = arith.divf %27, %28 : vector<8x1xf32>
    %cst_15 = arith.constant 0.000000e+00 : f32
    %30 = vector.broadcast %cst_15 : f32 to vector<8x1xf32>
    %31 = arith.subf %30, %24 : vector<8x1xf32>
    %32 = arith.negf %31 : vector<8x1xf32>
    %33 = math.exp %32 : vector<8x1xf32>
    %cst_16 = arith.constant 1.000000e+00 : f32
    %34 = vector.broadcast %cst_16 : f32 to vector<8x1xf32>
    %35 = arith.addf %34, %33 : vector<8x1xf32>
    %36 = arith.divf %34, %35 : vector<8x1xf32>
    %37 = tpu.iota {dimensions = array<i32: 1>} : vector<8x2xi32>
    %c0_i32 = arith.constant 0 : i32
    %38 = vector.broadcast %c0_i32 : i32 to vector<8x2xi32>
    %39 = arith.cmpi eq, %37, %38 : vector<8x2xi32>
    %40 = vector.shape_cast %36 : vector<8x1xf32> to vector<8x1xf32>
    %41 = vector.broadcast %40 : vector<8x1xf32> to vector<8x2xf32>
    %42 = vector.shape_cast %29 : vector<8x1xf32> to vector<8x1xf32>
    %43 = vector.broadcast %42 : vector<8x1xf32> to vector<8x2xf32>
    %44 = arith.select %39, %41, %43 : vector<8x2xi1>, vector<8x2xf32>
    %c0_17 = arith.constant 0 : index
    %c0_18 = arith.constant 0 : index
    %45 = vector.load %arg6[%c0_17, %c0_18] : memref<8x2xf32, #tpu.memory_space<vmem>>, vector<8x2xf32>
    tpu.vector_store %arg6[%c0_17, %c0_18], %44 {strides = array<i32>} : memref<8x2xf32, #tpu.memory_space<vmem>>, vector<8x2xf32>,
    return
  }
}

</mosaic_0001>

<llo_original>
// kernel: tpu_custom_call.1
$region0: #{tpu_custom_call.1}
  #allocation0 [shape = 'u32[]', space=smem, size = 0x4, offset = 0x4, fixed_abs, tag = 'smem constant byte address 0x4 - core index']
  #allocation1 [shape = 'u32[144,128]{1,0:T(1,128)}', space=vmem, size = 0x12000, scoped, tag = 'internal scratch']
  %s0 = inlined_call_operand.vmem [shape: f32[8,8], index: 0, kind: input, shape index: {}]
  %s1 = inlined_call_operand.vmem [shape: f32[8,4], index: 1, kind: input, shape index: {}]
  %s2 = inlined_call_operand.vmem [shape: f32[8,4], index: 2, kind: input, shape index: {}]
  %s3 = inlined_call_operand.vmem [shape: f32[9,32], index: 3, kind: input, shape index: {}]
  %s4 = inlined_call_operand.vmem [shape: f32[5,32], index: 4, kind: input, shape index: {}]
  %s5 = inlined_call_operand.vmem [shape: f32[5,32], index: 5, kind: input, shape index: {}]
  %s6 = inlined_call_operand.vmem [shape: f32[8,2], index: 6, kind: output, shape index: {}]
  %s7 = sld [smem:[#allocation0]]
  $region34: #{tpu_custom_call.1} parent=0
    _
  %s9 = ssub.s32 1, %s7
  %s10 = scalar_select 0, %s9, %s7
  // Predicated region
  $region2: #{tpu_custom_call.1} parent=0 // pred_check
    _
  $region3: #{tpu_custom_call.1} parent=0 // pred_check_branch
    %12 = sbr.rel (0) target = $region5
  $region4: #{tpu_custom_call.1} parent=0 // pred_region
    _
  $region5: #{tpu_custom_call.1} parent=0 // pred_fallthru
    _
  // Predicated region
  $region6: #{tpu_custom_call.1} parent=0 // pred_check
    _
  $region7: #{tpu_custom_call.1} parent=0 // pred_check_branch
    %14 = sbr.rel (0) target = $region9
  $region8: #{tpu_custom_call.1} parent=0 // pred_region
    _
  $region9: #{tpu_custom_call.1} parent=0 // pred_fallthru
    _
  // Predicated region
  $region10: #{tpu_custom_call.1} parent=0 // pred_check
    _
  $region11: #{tpu_custom_call.1} parent=0 // pred_check_branch
    %16 = sbr.rel (0) target = $region13
  $region12: #{tpu_custom_call.1} parent=0 // pred_region
    _
  $region13: #{tpu_custom_call.1} parent=0 // pred_fallthru
    _
  // Predicated region
  $region14: #{tpu_custom_call.1} parent=0 // pred_check
    _
  $region15: #{tpu_custom_call.1} parent=0 // pred_check_branch
    %18 = sbr.rel (0) target = $region17
  $region16: #{tpu_custom_call.1} parent=0 // pred_region
    _
  $region17: #{tpu_custom_call.1} parent=0 // pred_fallthru
    _
  // Predicated region
  $region18: #{tpu_custom_call.1} parent=0 // pred_check
    _
  $region19: #{tpu_custom_call.1} parent=0 // pred_check_branch
    %20 = sbr.rel (0) target = $region21
  $region20: #{tpu_custom_call.1} parent=0 // pred_region
    _
  $region21: #{tpu_custom_call.1} parent=0 // pred_fallthru
    _
  // Predicated region
  $region22: #{tpu_custom_call.1} parent=0 // pred_check
    _
  $region23: #{tpu_custom_call.1} parent=0 // pred_check_branch
    %22 = sbr.rel (0) target = $region25
  $region24: #{tpu_custom_call.1} parent=0 // pred_region
    _
  $region25: #{tpu_custom_call.1} parent=0 // pred_fallthru
    _
  %v23 = vld [vmem:[%s3] sm:$0xff]
  %v24 = vld [vmem:[%s3 + $0x8] sm:$0x1]
  %v25 = vld [vmem:[%s0] sm:$0xff]
  %v26 = vlaneseq
  %v27 = vshrl.u32 %v26, 7
  %v28 = vsub.s32 0, %v27
  %v29 = vrot.slane %v24, %v28
  %vm30 = vcmask 64512
  %v32 = vsel %vm30, %v25, 0
  %34 = vmatprep.subr.mxu0 0.0
  %35 = vmatpush1.msra.mxu0 %v23
  %36 = vmatprep.subr.mxu0 0.0
  %37 = vmatpush1.msra.mxu0 0.0
  %38 = vmatprep.subr.mxu0 0.0
  %39 = vmatpush1.msra.mxu0 0.0
  %40 = vmatprep.subr.mxu0 0.0
  %41 = vmatpush1.msra.mxu0 0.0
  %42 = vmatprep.subr.mxu0 0.0
  %43 = vmatpush1.msra.mxu0 0.0
  %44 = vmatprep.subr.mxu0 0.0
  %45 = vmatpush1.msra.mxu0 0.0
  %46 = vmatprep.subr.mxu0 0.0
  %47 = vmatpush1.msra.mxu0 0.0
  %48 = vmatprep.subr.mxu0 0.0
  %49 = vmatpush1.msra.mxu0 0.0
  %50 = vmatprep.subr.mxu0 0.0
  %51 = vmatpush1.msra.mxu0 0.0
  %52 = vmatprep.subr.mxu0 0.0
  %53 = vmatpush1.msra.mxu0 0.0
  %54 = vmatprep.subr.mxu0 0.0
  %55 = vmatpush1.msra.mxu0 0.0
  %56 = vmatprep.subr.mxu0 0.0
  %57 = vmatpush1.msra.mxu0 0.0
  %58 = vmatprep.subr.mxu0 0.0
  %59 = vmatpush1.msra.mxu0 0.0
  %60 = vmatprep.subr.mxu0 0.0
  %61 = vmatpush1.msra.mxu0 0.0
  %62 = vmatprep.subr.mxu0 0.0
  %63 = vmatpush1.msra.mxu0 0.0
  %64 = vmatprep.subr.mxu0 0.0
  %65 = vmatpush1.msra.mxu0 0.0
  %66 = vmatprep.subr.mxu0 0.0
  %67 = vmatpush1.msra.mxu0 0.0
  %68 = vmatprep.subr.mxu0 0.0
  %69 = vmatpush1.msra.mxu0 0.0
  %70 = vmatprep.subr.mxu0 0.0
  %71 = vmatpush1.msra.mxu0 0.0
  %72 = vmatprep.subr.mxu0 0.0
  %73 = vmatpush1.msra.mxu0 0.0
  %74 = vmatprep.subr.mxu0 0.0
  %75 = vmatpush1.msra.mxu0 0.0
  %76 = vmatprep.subr.mxu0 0.0
  %77 = vmatpush1.msra.mxu0 0.0
  %78 = vmatprep.subr.mxu0 0.0
  %79 = vmatpush1.msra.mxu0 0.0
  %80 = vmatprep.subr.mxu0 0.0
  %81 = vmatpush1.msra.mxu0 0.0
  %82 = vmatprep.subr.mxu0 0.0
  %83 = vmatpush1.msra.mxu0 0.0
  %84 = vmatprep.subr.mxu0 0.0
  %85 = vmatpush1.msra.mxu0 0.0
  %86 = vmatprep.subr.mxu0 0.0
  %87 = vmatpush1.msra.mxu0 0.0
  %88 = vmatprep.subr.mxu0 0.0
  %89 = vmatpush1.msra.mxu0 0.0
  %90 = vmatprep.subr.mxu0 0.0
  %91 = vmatpush1.msra.mxu0 0.0
  %92 = vmatprep.subr.mxu0 0.0
  %93 = vmatpush1.msra.mxu0 0.0
  %94 = vmatprep.subr.mxu0 0.0
  %95 = vmatpush1.msra.mxu0 0.0
  %96 = vmatprep.subr.mxu0 0.0
  %97 = vmatpush1.msra.mxu0 0.0
  %98 = vmatprep.mubr.f32.mxu0 0.0
  %99 = vmatmul.mubr.f32.gmra.mrb[0].mxu0 %v32
  %v100 = vpop.f32.mrb[0].mxu0
  %v101 = vadd.f32 %v29, %v100
  %v102 = vpop.f32.mrb[0].mxu0
  %103 = vdwg.mxu0
  %v104 = vld [vmem:[%s4] sm:$0x1f]
  %v105 = vld [vmem:[%s1] sm:$0xff]
  %v106 = vlaneseq
  %v107 = vshrl.u32 %v106, 7
  %v108 = vsub.s32 4, %v107
  %v109 = vrot.slane %v104, %v108
  %vm110 = vcmask 31744
  %v112 = vsel %vm110, %v105, 0
  %vm114 = vcmask 1043456
  %v116 = vsel %vm114, %v104, 0
  %118 = vmatprep.subr.mxu0 0.0
  %119 = vmatpush1.msra.mxu0 %v116
  %120 = vmatprep.subr.mxu0 0.0
  %121 = vmatpush1.msra.mxu0 0.0
  %122 = vmatprep.subr.mxu0 0.0
  %123 = vmatpush1.msra.mxu0 0.0
  %124 = vmatprep.subr.mxu0 0.0
  %125 = vmatpush1.msra.mxu0 0.0
  %126 = vmatprep.subr.mxu0 0.0
  %127 = vmatpush1.msra.mxu0 0.0
  %128 = vmatprep.subr.mxu0 0.0
  %129 = vmatpush1.msra.mxu0 0.0
  %130 = vmatprep.subr.mxu0 0.0
  %131 = vmatpush1.msra.mxu0 0.0
  %132 = vmatprep.subr.mxu0 0.0
  %133 = vmatpush1.msra.mxu0 0.0
  %134 = vmatprep.subr.mxu0 0.0
  %135 = vmatpush1.msra.mxu0 0.0
  %136 = vmatprep.subr.mxu0 0.0
  %137 = vmatpush1.msra.mxu0 0.0
  %138 = vmatprep.subr.mxu0 0.0
  %139 = vmatpush1.msra.mxu0 0.0
  %140 = vmatprep.subr.mxu0 0.0
  %141 = vmatpush1.msra.mxu0 0.0
  %142 = vmatprep.subr.mxu0 0.0
  %143 = vmatpush1.msra.mxu0 0.0
  %144 = vmatprep.subr.mxu0 0.0
  %145 = vmatpush1.msra.mxu0 0.0
  %146 = vmatprep.subr.mxu0 0.0
  %147 = vmatpush1.msra.mxu0 0.0
  %148 = vmatprep.subr.mxu0 0.0
  %149 = vmatpush1.msra.mxu0 0.0
  %150 = vmatprep.subr.mxu0 0.0
  %151 = vmatpush1.msra.mxu0 0.0
  %152 = vmatprep.subr.mxu0 0.0
  %153 = vmatpush1.msra.mxu0 0.0
  %154 = vmatprep.subr.mxu0 0.0
  %155 = vmatpush1.msra.mxu0 0.0
  %156 = vmatprep.subr.mxu0 0.0
  %157 = vmatpush1.msra.mxu0 0.0
  %158 = vmatprep.subr.mxu0 0.0
  %159 = vmatpush1.msra.mxu0 0.0
  %160 = vmatprep.subr.mxu0 0.0
  %161 = vmatpush1.msra.mxu0 0.0
  %162 = vmatprep.subr.mxu0 0.0
  %163 = vmatpush1.msra.mxu0 0.0
  %164 = vmatprep.subr.mxu0 0.0
  %165 = vmatpush1.msra.mxu0 0.0
  %166 = vmatprep.subr.mxu0 0.0
  %167 = vmatpush1.msra.mxu0 0.0
  %168 = vmatprep.subr.mxu0 0.0
  %169 = vmatpush1.msra.mxu0 0.0
  %170 = vmatprep.subr.mxu0 0.0
  %171 = vmatpush1.msra.mxu0 0.0
  %172 = vmatprep.subr.mxu0 0.0
  %173 = vmatpush1.msra.mxu0 0.0
  %174 = vmatprep.subr.mxu0 0.0
  %175 = vmatpush1.msra.mxu0 0.0
  %176 = vmatprep.subr.mxu0 0.0
  %177 = vmatpush1.msra.mxu0 0.0
  %178 = vmatprep.subr.mxu0 0.0
  %179 = vmatpush1.msra.mxu0 0.0
  %180 = vmatprep.subr.mxu0 0.0
  %181 = vmatpush1.msra.mxu0 0.0
  %182 = vmatprep.mubr.f32.mxu0 0.0
  %183 = vmatmul.mubr.f32.gmra.mrb[0].mxu0 %v112
  %v184 = vpop.f32.mrb[0].mxu0
  %v185 = vadd.f32 %v109, %v184
  %v186 = vpop.f32.mrb[0].mxu0
  %187 = vdwg.mxu0
  %v188 = vld [vmem:[%s5] sm:$0x1f]
  %v189 = vld [vmem:[%s2] sm:$0xff]
  %v190 = vlaneseq
  %v191 = vshrl.u32 %v190, 7
  %v192 = vsub.s32 4, %v191
  %v193 = vrot.slane %v188, %v192
  %v195 = vsel %vm110, %v189, 0
  %v198 = vsel %vm114, %v188, 0
  %200 = vmatprep.subr.mxu0 0.0
  %201 = vmatpush1.msra.mxu0 %v198
  %202 = vmatprep.subr.mxu0 0.0
  %203 = vmatpush1.msra.mxu0 0.0
  %204 = vmatprep.subr.mxu0 0.0
  %205 = vmatpush1.msra.mxu0 0.0
  %206 = vmatprep.subr.mxu0 0.0
  %207 = vmatpush1.msra.mxu0 0.0
  %208 = vmatprep.subr.mxu0 0.0
  %209 = vmatpush1.msra.mxu0 0.0
  %210 = vmatprep.subr.mxu0 0.0
  %211 = vmatpush1.msra.mxu0 0.0
  %212 = vmatprep.subr.mxu0 0.0
  %213 = vmatpush1.msra.mxu0 0.0
  %214 = vmatprep.subr.mxu0 0.0
  %215 = vmatpush1.msra.mxu0 0.0
  %216 = vmatprep.subr.mxu0 0.0
  %217 = vmatpush1.msra.mxu0 0.0
  %218 = vmatprep.subr.mxu0 0.0
  %219 = vmatpush1.msra.mxu0 0.0
  %220 = vmatprep.subr.mxu0 0.0
  %221 = vmatpush1.msra.mxu0 0.0
  %222 = vmatprep.subr.mxu0 0.0
  %223 = vmatpush1.msra.mxu0 0.0
  %224 = vmatprep.subr.mxu0 0.0
  %225 = vmatpush1.msra.mxu0 0.0
  %226 = vmatprep.subr.mxu0 0.0
  %227 = vmatpush1.msra.mxu0 0.0
  %228 = vmatprep.subr.mxu0 0.0
  %229 = vmatpush1.msra.mxu0 0.0
  %230 = vmatprep.subr.mxu0 0.0
  %231 = vmatpush1.msra.mxu0 0.0
  %232 = vmatprep.subr.mxu0 0.0
  %233 = vmatpush1.msra.mxu0 0.0
  %234 = vmatprep.subr.mxu0 0.0
  %235 = vmatpush1.msra.mxu0 0.0
  %236 = vmatprep.subr.mxu0 0.0
  %237 = vmatpush1.msra.mxu0 0.0
  %238 = vmatprep.subr.mxu0 0.0
  %239 = vmatpush1.msra.mxu0 0.0
  %240 = vmatprep.subr.mxu0 0.0
  %241 = vmatpush1.msra.mxu0 0.0
  %242 = vmatprep.subr.mxu0 0.0
  %243 = vmatpush1.msra.mxu0 0.0
  %244 = vmatprep.subr.mxu0 0.0
  %245 = vmatpush1.msra.mxu0 0.0
  %246 = vmatprep.subr.mxu0 0.0
  %247 = vmatpush1.msra.mxu0 0.0
  %248 = vmatprep.subr.mxu0 0.0
  %249 = vmatpush1.msra.mxu0 0.0
  %250 = vmatprep.subr.mxu0 0.0
  %251 = vmatpush1.msra.mxu0 0.0
  %252 = vmatprep.subr.mxu0 0.0
  %253 = vmatpush1.msra.mxu0 0.0
  %254 = vmatprep.subr.mxu0 0.0
  %255 = vmatpush1.msra.mxu0 0.0
  %256 = vmatprep.subr.mxu0 0.0
  %257 = vmatpush1.msra.mxu0 0.0
  %258 = vmatprep.subr.mxu0 0.0
  %259 = vmatpush1.msra.mxu0 0.0
  %260 = vmatprep.subr.mxu0 0.0
  %261 = vmatpush1.msra.mxu0 0.0
  %262 = vmatprep.subr.mxu0 0.0
  %263 = vmatpush1.msra.mxu0 0.0
  %264 = vmatprep.mubr.f32.mxu0 0.0
  %265 = vmatmul.mubr.f32.gmra.mrb[0].mxu0 %v195
  %v266 = vpop.f32.mrb[0].mxu0
  %v267 = vadd.f32 %v193, %v266
  %v268 = vpop.f32.mrb[0].mxu0
  %269 = vdwg.mxu0
  %v270 = vmul.f32 %v101, %v185
  %v271 = vmul.f32 %v270, %v267
  %vm272 = vcmask 261120
  %v273 = vsel %vm272, %v271, 0.0
  %274 = vadd.xlane.f32.xlu0 %v273
  %v275 = vpop.xlane.xlu0 %274
  %v276 = vxor.u32 %v275, 2147483648
  %v277 = vmul.f32 %v276, 1.442695
  %v278 = vpow.pop %v277
  %v279 = vadd.f32 %v278, 1.0
  %v280 = vrcp.pop %v279
  %v281 = vmul.f32 1.0, %v280
  %v282 = vsub.f32 0.0, %v275
  %v283 = vxor.u32 %v282, 2147483648
  %v284 = vmul.f32 %v283, 1.442695
  %v285 = vpow.pop %v284
  %v286 = vadd.f32 %v285, 1.0
  %v287 = vrcp.pop %v286
  %v288 = vmul.f32 1.0, %v287
  %v289 = vlaneseq
  %v290 = vand.u32 %v289, 127
  %vm291 = vcmp.eq.s32.totalorder %v290, 0
  %v292 = vsel %vm291, %v288, %v281
  %vm293 = vcmask 15360
  %294 = vst.msk [vmem:[%s6] sm:$0xff] %vm293, %v292
  // Predicated region
  $region26: #{tpu_custom_call.1} parent=0 // pred_check
    _
  $region27: #{tpu_custom_call.1} parent=0 // pred_check_branch
    %296 = sbr.rel (0) target = $region29
  $region28: #{tpu_custom_call.1} parent=0 // pred_region
    _
  $region29: #{tpu_custom_call.1} parent=0 // pred_fallthru
    _
  // Predicated region
  $region30: #{tpu_custom_call.1} parent=0 // pred_check
    _
  $region31: #{tpu_custom_call.1} parent=0 // pred_check_branch
    %298 = sbr.rel (0) target = $region33
  $region32: #{tpu_custom_call.1} parent=0 // pred_region
    _
  $region33: #{tpu_custom_call.1} parent=0 // pred_fallthru
    _

</llo_original>
